<compile_context>
chip_gen: v7x
topology: tpu7x:2x2x1
jax: 0.10.0
libtpu: 0.0.40
codegen_flags: <defaults>
</compile_context>

<pallas_src>
import functools

import jax
import jax.numpy as jnp
from jax.experimental import pallas as pl
from jax.experimental.pallas import tpu as pltpu

EPS = 1e-5
_F32 = 4  # bytes; all block budgets are computed in f32-equivalent bytes


# ---------------------------------------------------------------------------
# Generation-aware budgets
# ---------------------------------------------------------------------------
@functools.lru_cache(maxsize=None)
def _chip_budgets():
    """Returns (vmem_limit_bytes, fused_block_budget, target_block_bytes, num_cores).

    fused_block_budget / target_block_bytes are in f32-equivalent bytes for ONE
    grid-step block; the /6 factor accounts for double-buffered in+out plus the
    in-kernel f32 temporaries (x upcast + one transient product).
    """
    vmem_bytes = 128 * 1024 * 1024
    try:
        info = pltpu.get_tpu_info()
        v = getattr(info, "vmem_capacity_bytes", None)
        if v:
            vmem_bytes = int(v)
    except Exception:
        pass
    # v7x has 64 MiB VMEM per TensorCore (and 2 TCs/chip); v5e/v6e have 128 MiB.
    is_small_vmem = vmem_bytes <= 80 * 1024 * 1024
    vmem_limit = min(vmem_bytes * 3 // 4, 96 * 1024 * 1024)      # 96 MiB or 48 MiB
    fused_budget = vmem_limit // 6                               # ~16 MiB or ~8 MiB
    target_block = (4 if is_small_vmem else 2) * 1024 * 1024     # bigger steps on v7x
    num_cores = 2 if is_small_vmem else 1
    return vmem_limit, fused_budget, target_block, num_cores


def _sublane_pack(dtype):
    """Minimum channel-tile granularity for dense sublane packing."""
    return max(8, 32 // jnp.dtype(dtype).itemsize)


# ---------------------------------------------------------------------------
# Tile-size helpers (byte-budgeted, divisibility-preserving)
# ---------------------------------------------------------------------------
def _pick_c_tile(c, f32_bytes_per_channel, budget, pack, min_block_bytes, min_blocks):
    """Pick a channel tile that is a divisor of c and a multiple of `pack`.

    Preference order:
      1. smallest tile whose block is >= min_block_bytes AND yields >= min_blocks
         grid blocks (maximizes core / pipeline parallelism while staying chunky);
      2. otherwise the largest tile that still yields >= min_blocks blocks;
      3. otherwise the largest tile that fits `budget`;
      4. if c is not a multiple of `pack`, the only legal tile is full C.
    """
    if c % pack != 0:
        # TODO(synk): pad C to the next multiple of `pack` instead of a full-C block.
        return c
    tiles = [t for t in range(pack, c + 1, pack) if c % t == 0]
    fitting = [t for t in tiles if t * f32_bytes_per_channel <= budget]
    if not fitting:
        return tiles[0]
    good = [t for t in fitting
            if t * f32_bytes_per_channel >= min_block_bytes and c // t >= min_blocks]
    if good:
        return min(good)
    enough = [t for t in fitting if c // t >= min_blocks]
    if enough:
        return max(enough)
    return max(fitting)


def _pick_hw_tile(hw, f32_bytes_per_hw_elem, cap):
    """Tile HW (multiples of 128) only when a full-HW slice exceeds `cap`."""
    if hw * f32_bytes_per_hw_elem <= cap or hw % 128 != 0:
        return hw
    fitting = [t for t in range(128, hw + 1, 128)
               if hw % t == 0 and t * f32_bytes_per_hw_elem <= cap]
    return max(fitting) if fitting else 128


def _pick_n_tile(n, f32_bytes_per_n, target):
    """Largest divisor of n whose block stays within `target` f32-equivalent bytes."""
    best = 1
    for d in range(1, n + 1):
        if n % d == 0 and d * f32_bytes_per_n <= target:
            best = d
    return best


# ---------------------------------------------------------------------------
# Fused single-pass kernel: stats + normalize, x read from HBM exactly once.
# Block: x (N, c_tile, HW); gamma/beta (1, c_tile, 1) selected by task_id.
# ---------------------------------------------------------------------------
def _bn_fused_kernel(task_ref, x_ref, gamma_ref, beta_ref, o_ref, *, inv_count):
    del task_ref  # only used by the index_maps (scalar prefetch)
    inv = jnp.float32(inv_count)
    x = x_ref[...].astype(jnp.float32)                        # (N, c_tile, HW)
    # Per-channel sums: reduce N (cheap VPU adds) first, lane (HW) axis last.
    s = jnp.sum(jnp.sum(x, axis=0, keepdims=True), axis=2, keepdims=True)
    s2 = jnp.sum(jnp.sum(x * x, axis=0, keepdims=True), axis=2, keepdims=True)
    mean = s * inv                                            # (1, c_tile, 1)
    # TODO(synk): E[x^2]-E[x]^2 can cancel for large-|mean| / low-precision inputs;
    # a shifted (Welford-style) accumulation would be more robust.
    var = s2 * inv - mean * mean                              # biased variance
    scale = gamma_ref[...] * jax.lax.rsqrt(var + EPS)
    shift = beta_ref[...] - mean * scale
    o_ref[...] = (x * scale + shift).astype(o_ref.dtype)      # single FMA / element


# ---------------------------------------------------------------------------
# Two-pass fallback, pass 1: per-channel sum / sum-of-squares -> scale, shift
# ---------------------------------------------------------------------------
def _bn_stats_kernel(task_ref, x_ref, gamma_ref, beta_ref,
                     scale_ref, shift_ref, sum_sc, sumsq_sc, *, inv_count):
    del task_ref
    nb = pl.program_id(1)
    hwb = pl.program_id(2)

    @pl.when(jnp.logical_and(nb == 0, hwb == 0))
    def _init():
        sum_sc[...] = jnp.zeros_like(sum_sc)
        sumsq_sc[...] = jnp.zeros_like(sumsq_sc)

    x = x_ref[...].astype(jnp.float32)                        # (n_tile, c_tile, hw_tile)
    sum_sc[...] += jnp.sum(jnp.sum(x, axis=0, keepdims=True), axis=2, keepdims=True)
    sumsq_sc[...] += jnp.sum(jnp.sum(x * x, axis=0, keepdims=True), axis=2, keepdims=True)

    @pl.when(jnp.logical_and(nb == pl.num_programs(1) - 1,
                             hwb == pl.num_programs(2) - 1))
    def _finalize():
        inv = jnp.float32(inv_count)
        mean = sum_sc[...] * inv
        # TODO(synk): same E[x^2]-E[x]^2 cancellation caveat as the fused kernel.
        var = sumsq_sc[...] * inv - mean * mean               # biased variance
        scale = gamma_ref[...] * jax.lax.rsqrt(var + EPS)
        scale_ref[...] = scale
        shift_ref[...] = beta_ref[...] - mean * scale


# ---------------------------------------------------------------------------
# Two-pass fallback, pass 2: single FMA per element with per-channel scale/shift
# ---------------------------------------------------------------------------
def _bn_apply_kernel(x_ref, scale_ref, shift_ref, o_ref):
    x = x_ref[...].astype(jnp.float32)                        # (n_tile, c_tile, hw_tile)
    o_ref[...] = (x * scale_ref[...] + shift_ref[...]).astype(o_ref.dtype)


# ---------------------------------------------------------------------------
# Wrapper
# ---------------------------------------------------------------------------
def batchnorm2d_pallas(x_nchw, gammas_col, betas_col, task_id, *,
                       force_two_pass=False, donate_input=False):
    """Training-mode BatchNorm2d forward on NCHW input, task-indexed gamma/beta.

    gammas_col / betas_col: (num_tasks, C, 1) float32 parameter tables; the task
    row is selected inside the kernels via scalar prefetch of task_id.
    """
    n, c, h, w = x_nchw.shape
    hw = h * w
    pack = _sublane_pack(x_nchw.dtype)
    vmem_limit, fused_budget, target_block, num_cores = _chip_budgets()
    min_blocks = 2 * num_cores

    x3 = x_nchw.reshape(n, c, hw)                             # NCHW-native, HW on lanes
    task = jnp.asarray([task_id], dtype=jnp.int32)
    inv_count = 1.0 / float(n * hw)

    # ---- fused single-pass path (whole per-channel slab fits the VMEM budget) ----
    f32_bytes_per_channel = n * hw * _F32                     # f32-temp-aware sizing
    c_tile_f = _pick_c_tile(c, f32_bytes_per_channel, fused_budget, pack,
                            min_block_bytes=1 << 20, min_blocks=min_blocks)
    use_fused = (not force_two_pass) and (
        c_tile_f * f32_bytes_per_channel <= fused_budget)

    if use_fused:
        y3 = pl.pallas_call(
            functools.partial(_bn_fused_kernel, inv_count=inv_count),
            out_shape=jax.ShapeDtypeStruct((n, c, hw), x3.dtype),
            grid_spec=pltpu.PrefetchScalarGridSpec(
                num_scalar_prefetch=1,
                grid=(c // c_tile_f,),
                in_specs=[
                    pl.BlockSpec((n, c_tile_f, hw), lambda cb, task: (0, cb, 0)),
                    pl.BlockSpec((1, c_tile_f, 1), lambda cb, task: (task[0], cb, 0)),
                    pl.BlockSpec((1, c_tile_f, 1), lambda cb, task: (task[0], cb, 0)),
                ],
                out_specs=pl.BlockSpec((n, c_tile_f, hw), lambda cb, task: (0, cb, 0)),
            ),
            compiler_params=pltpu.CompilerParams(
                dimension_semantics=("parallel",),            # channel blocks -> both TCs on v7x
                vmem_limit_bytes=vmem_limit,
            ),
        )(task, x3, gammas_col, betas_col)
        return y3.reshape(n, c, h, w)

    # ---- two-pass fallback ----
    per_block_cap = max(vmem_limit // 6, target_block)
    c_tile = _pick_c_tile(c, hw * _F32, target_block, pack,
                          min_block_bytes=target_block // 2, min_blocks=min_blocks)
    hw_tile = _pick_hw_tile(hw, c_tile * _F32, per_block_cap)
    n_tile = _pick_n_tile(n, c_tile * hw_tile * _F32, target_block)
    grid = (c // c_tile, n // n_tile, hw // hw_tile)

    scale, shift = pl.pallas_call(
        functools.partial(_bn_stats_kernel, inv_count=inv_count),
        out_shape=(
            jax.ShapeDtypeStruct((1, c, 1), jnp.float32),
            jax.ShapeDtypeStruct((1, c, 1), jnp.float32),
        ),
        grid_spec=pltpu.PrefetchScalarGridSpec(
            num_scalar_prefetch=1,
            grid=grid,
            in_specs=[
                pl.BlockSpec((n_tile, c_tile, hw_tile),
                             lambda cb, nb, hwb, task: (nb, cb, hwb)),
                pl.BlockSpec((1, c_tile, 1),
                             lambda cb, nb, hwb, task: (task[0], cb, 0)),
                pl.BlockSpec((1, c_tile, 1),
                             lambda cb, nb, hwb, task: (task[0], cb, 0)),
            ],
            out_specs=[
                pl.BlockSpec((1, c_tile, 1), lambda cb, nb, hwb, task: (0, cb, 0)),
                pl.BlockSpec((1, c_tile, 1), lambda cb, nb, hwb, task: (0, cb, 0)),
            ],
            scratch_shapes=[
                pltpu.VMEM((1, c_tile, 1), jnp.float32),
                pltpu.VMEM((1, c_tile, 1), jnp.float32),
            ],
        ),
        compiler_params=pltpu.CompilerParams(
            dimension_semantics=("parallel", "arbitrary", "arbitrary"),
            vmem_limit_bytes=vmem_limit,
        ),
    )(task, x3, gammas_col, betas_col)

    y3 = pl.pallas_call(
        _bn_apply_kernel,
        out_shape=jax.ShapeDtypeStruct((n, c, hw), x3.dtype),
        grid_spec=pltpu.PrefetchScalarGridSpec(
            num_scalar_prefetch=0,
            grid=grid,
            in_specs=[
                pl.BlockSpec((n_tile, c_tile, hw_tile), lambda cb, nb, hwb: (nb, cb, hwb)),
                pl.BlockSpec((1, c_tile, 1), lambda cb, nb, hwb: (0, cb, 0)),
                pl.BlockSpec((1, c_tile, 1), lambda cb, nb, hwb: (0, cb, 0)),
            ],
            out_specs=pl.BlockSpec((n_tile, c_tile, hw_tile),
                                   lambda cb, nb, hwb: (nb, cb, hwb)),
        ),
        compiler_params=pltpu.CompilerParams(
            dimension_semantics=("parallel", "parallel", "parallel"),
            vmem_limit_bytes=vmem_limit,
        ),
        input_output_aliases=({0: 0} if donate_input else {}),
    )(x3, scale, shift)
    return y3.reshape(n, c, h, w)


class MultitaskBNPallas:
    """Holds per-task (gamma, beta); forward(x, task_id) applies that task's BN."""

    def __init__(self, dim, num_tasks, affine=True, key=None):
        self.dim = dim
        self.num_tasks = num_tasks
        self.affine = affine
        if affine:
            # Deterministic synthetic init (per-task distinct so selection matters).
            key = jax.random.PRNGKey(0) if key is None else key
            kg, kb = jax.random.split(key)
            self.gammas = 1.0 + 0.1 * jax.random.normal(
                kg, (num_tasks, dim), dtype=jnp.float32)
            self.betas = 0.1 * jax.random.normal(
                kb, (num_tasks, dim), dtype=jnp.float32)
        else:
            self.gammas = jnp.ones((num_tasks, dim), dtype=jnp.float32)
            self.betas = jnp.zeros((num_tasks, dim), dtype=jnp.float32)
        # Column layout (num_tasks, C, 1): broadcasts along the lane (H*W) axis in
        # the kernels; the task row is picked via scalar prefetch of task_id.
        self._gammas_col = self.gammas[:, :, None]
        self._betas_col = self.betas[:, :, None]

    def __call__(self, x_nchw, task_id, *, force_two_pass=False):
        return batchnorm2d_pallas(
            x_nchw, self._gammas_col, self._betas_col, task_id,
            force_two_pass=force_two_pass)


def _reference_bn(x_nchw, gamma, beta):
    x = x_nchw.astype(jnp.float32)
    mean = jnp.mean(x, axis=(0, 2, 3), keepdims=True)
    var = jnp.mean((x - mean) ** 2, axis=(0, 2, 3), keepdims=True)  # biased
    g = gamma.reshape(1, -1, 1, 1)
    b = beta.reshape(1, -1, 1, 1)
    return (x - mean) / jnp.sqrt(var + EPS) * g + b


if __name__ == "__main__":
    key = jax.random.PRNGKey(0)
    kx, kp, kx2, kp2 = jax.random.split(key, 4)

    # Small shape consistent with the module: batch=2, channels=4, spatial=16.
    N, C, H, W = 2, 4, 16, 16
    num_tasks = 3
    task_id = 1

    x = jax.random.normal(kx, (N, C, H, W), dtype=jnp.float32)
    mbn = MultitaskBNPallas(dim=C, num_tasks=num_tasks, affine=True, key=kp)
    y_ref = _reference_bn(x, mbn.gammas[task_id], mbn.betas[task_id])

    # Fused single-pass path (default for shapes that fit the VMEM budget).
    y = jax.block_until_ready(mbn(x, task_id))
    assert y.shape == (N, C, H, W)
    assert jnp.max(jnp.abs(y - y_ref)) < 1e-4

    # Two-pass (stats + apply) fallback path.
    y2 = jax.block_until_ready(mbn(x, task_id, force_two_pass=True))
    assert jnp.max(jnp.abs(y2 - y_ref)) < 1e-4

    # A second small case with pack-aligned channels to exercise a multi-block
    # parallel channel grid (C=16 -> c_tile=8 -> 2 blocks).
    C2 = 16
    x2 = jax.random.normal(kx2, (N, C2, H, W), dtype=jnp.float32)
    mbn2 = MultitaskBNPallas(dim=C2, num_tasks=num_tasks, affine=True, key=kp2)
    y2_ref = _reference_bn(x2, mbn2.gammas[2], mbn2.betas[2])
    y2a = jax.block_until_ready(mbn2(x2, 2))
    assert jnp.max(jnp.abs(y2a - y2_ref)) < 1e-4
    y2b = jax.block_until_ready(mbn2(x2, 2, force_two_pass=True))
    assert jnp.max(jnp.abs(y2b - y2_ref)) < 1e-4

    print("KERNEL_OK")
</pallas_src>

<mosaic_0001>
module attributes {stable_mosaic.version = 11 : i64} {
  func.func @_bn_fused_kernel(%arg0: i32, %arg1: memref<1xi32, #tpu.memory_space<smem>>, %arg2: memref<2x4x256xf32, #tpu.memory_space<vmem>>, %arg3: memref<1x4x1xf32, #tpu.memory_space<vmem>>, %arg4: memref<1x4x1xf32, #tpu.memory_space<vmem>>, %arg5: memref<2x4x256xf32, #tpu.memory_space<vmem>>) attributes {dimension_semantics = [#tpu.dimension_semantics<parallel>], iteration_bounds = array<i64: 1>, scalar_prefetch = 1 : i64, scratch_operands = 0 : i64, tpu.core_type = #tpu.core_type<tc>, window_params = [{transform_indices = @transform_0, window_bounds = array<i64: 2, 4, 256>}, {transform_indices = @transform_1, window_bounds = array<i64: 1, 4, 1>}, {transform_indices = @transform_2, window_bounds = array<i64: 1, 4, 1>}, {transform_indices = @transform_3, window_bounds = array<i64: 2, 4, 256>}]} {
    %c0 = arith.constant 0 : index
    %c0_0 = arith.constant 0 : index
    %c0_1 = arith.constant 0 : index
    %0 = vector.load %arg2[%c0, %c0_0, %c0_1] : memref<2x4x256xf32, #tpu.memory_space<vmem>>, vector<2x4x256xf32>
    %cst = arith.constant dense<0.000000e+00> : vector<4x256xf32>
    %1 = vector.multi_reduction <add>, %0, %cst [0] : vector<2x4x256xf32> to vector<4x256xf32>
    %2 = vector.shape_cast %1 : vector<4x256xf32> to vector<1x4x256xf32>
    %cst_2 = arith.constant dense<0.000000e+00> : vector<1x4xf32>
    %3 = vector.multi_reduction <add>, %2, %cst_2 [2] : vector<1x4x256xf32> to vector<1x4xf32>
    %4 = vector.shape_cast %3 : vector<1x4xf32> to vector<1x4x1xf32>
    %5 = arith.mulf %0, %0 : vector<2x4x256xf32>
    %cst_3 = arith.constant dense<0.000000e+00> : vector<4x256xf32>
    %6 = vector.multi_reduction <add>, %5, %cst_3 [0] : vector<2x4x256xf32> to vector<4x256xf32>
    %7 = vector.shape_cast %6 : vector<4x256xf32> to vector<1x4x256xf32>
    %cst_4 = arith.constant dense<0.000000e+00> : vector<1x4xf32>
    %8 = vector.multi_reduction <add>, %7, %cst_4 [2] : vector<1x4x256xf32> to vector<1x4xf32>
    %9 = vector.shape_cast %8 : vector<1x4xf32> to vector<1x4x1xf32>
    %cst_5 = arith.constant 0.001953125 : f32
    %10 = vector.broadcast %cst_5 : f32 to vector<1x4x1xf32>
    %11 = arith.mulf %4, %10 : vector<1x4x1xf32>
    %cst_6 = arith.constant 0.001953125 : f32
    %12 = vector.broadcast %cst_6 : f32 to vector<1x4x1xf32>
    %13 = arith.mulf %9, %12 : vector<1x4x1xf32>
    %14 = arith.mulf %11, %11 : vector<1x4x1xf32>
    %15 = arith.subf %13, %14 : vector<1x4x1xf32>
    %c0_7 = arith.constant 0 : index
    %c0_8 = arith.constant 0 : index
    %c0_9 = arith.constant 0 : index
    %16 = vector.load %arg3[%c0_7, %c0_8, %c0_9] : memref<1x4x1xf32, #tpu.memory_space<vmem>>, vector<1x4x1xf32>
    %cst_10 = arith.constant 9.99999974E-6 : f32
    %17 = vector.broadcast %cst_10 : f32 to vector<1x4x1xf32>
    %18 = arith.addf %15, %17 : vector<1x4x1xf32>
    %19 = math.rsqrt %18 : vector<1x4x1xf32>
    %20 = arith.mulf %16, %19 : vector<1x4x1xf32>
    %c0_11 = arith.constant 0 : index
    %c0_12 = arith.constant 0 : index
    %c0_13 = arith.constant 0 : index
    %21 = vector.load %arg4[%c0_11, %c0_12, %c0_13] : memref<1x4x1xf32, #tpu.memory_space<vmem>>, vector<1x4x1xf32>
    %22 = arith.mulf %11, %20 : vector<1x4x1xf32>
    %23 = arith.subf %21, %22 : vector<1x4x1xf32>
    %24 = vector.broadcast %20 : vector<1x4x1xf32> to vector<2x4x256xf32>
    %25 = arith.mulf %0, %24 : vector<2x4x256xf32>
    %26 = vector.broadcast %23 : vector<1x4x1xf32> to vector<2x4x256xf32>
    %27 = arith.addf %25, %26 : vector<2x4x256xf32>
    %c0_14 = arith.constant 0 : index
    %c0_15 = arith.constant 0 : index
    %c0_16 = arith.constant 0 : index
    %28 = vector.load %arg5[%c0_14, %c0_15, %c0_16] : memref<2x4x256xf32, #tpu.memory_space<vmem>>, vector<2x4x256xf32>
    tpu.vector_store %arg5[%c0_14, %c0_15, %c0_16], %27 {strides = array<i32>} : memref<2x4x256xf32, #tpu.memory_space<vmem>>, vector<2x4x256xf32>,
    return
  }
  func.func @transform_0(%arg0: i32, %arg1: memref<1xi32, #tpu.memory_space<smem>>) -> (i32, i32, i32) {
    %c0_i32 = arith.constant 0 : i32
    %c0_i32_0 = arith.constant 0 : i32
    %c0_i32_1 = arith.constant 0 : i32
    return %c0_i32, %arg0, %c0_i32_0 : i32, i32, i32
  }
  func.func @transform_1(%arg0: i32, %arg1: memref<1xi32, #tpu.memory_space<smem>>) -> (i32, i32, i32) {
    %c0 = arith.constant 0 : index
    %0 = memref.load %arg1[%c0] : memref<1xi32, #tpu.memory_space<smem>>
    %c0_i32 = arith.constant 0 : i32
    %c0_i32_0 = arith.constant 0 : i32
    return %0, %arg0, %c0_i32 : i32, i32, i32
  }
  func.func @transform_2(%arg0: i32, %arg1: memref<1xi32, #tpu.memory_space<smem>>) -> (i32, i32, i32) {
    %c0 = arith.constant 0 : index
    %0 = memref.load %arg1[%c0] : memref<1xi32, #tpu.memory_space<smem>>
    %c0_i32 = arith.constant 0 : i32
    %c0_i32_0 = arith.constant 0 : i32
    return %0, %arg0, %c0_i32 : i32, i32, i32
  }
  func.func @transform_3(%arg0: i32, %arg1: memref<1xi32, #tpu.memory_space<smem>>) -> (i32, i32, i32) {
    %c0_i32 = arith.constant 0 : i32
    %c0_i32_0 = arith.constant 0 : i32
    %c0_i32_1 = arith.constant 0 : i32
    return %c0_i32, %arg0, %c0_i32_0 : i32, i32, i32
  }
}

</mosaic_0001>

<llo_original>
// kernel: tpu_custom_call.1
$region0: #{tpu_custom_call.1}
  #allocation0 [shape = 'u32[]', space=smem, size = 0x4, offset = 0x4, fixed_abs, tag = 'smem constant byte address 0x4 - core index']
  #allocation1 [shape = 'u32[144,128]{1,0:T(1,128)}', space=vmem, size = 0x12000, scoped, tag = 'internal scratch']
  #allocation2 [shape = 's32[1]{0}', space=sflag, size = 0x4, scoped, tag = 'scoped memory for tpu_custom_call.1']
  #allocation3 [shape = 's32[1]{0:T(128)S(6)}', space=smem, size = 0x200, scoped, tag = 'prefetched SMEM operand 0']
  %s0 = inlined_call_operand.<no memory space> [shape: s32[1], index: 0, kind: input, shape index: {}]
  %s1 = inlined_call_operand.hbm [shape: f32[2,4,256], index: 1, kind: input, shape index: {}]
  %s2 = inlined_call_operand.hbm [shape: f32[3,4,1], index: 2, kind: input, shape index: {}]
  %s3 = inlined_call_operand.hbm [shape: f32[3,4,1], index: 3, kind: input, shape index: {}]
  %s4 = inlined_call_operand.hbm [shape: f32[2,4,256], index: 4, kind: output, shape index: {}]
  %s5 = sld [smem:[#allocation0]]
  $region34: #{tpu_custom_call.1} parent=0
    _
  %s7 = ssub.s32 1, %s5
  %s8 = scalar_select 0, %s7, %s5
  %9 = sst [smem:[#allocation3]] %s0
  $region1: #{tpu_custom_call.1} parent=0
    #allocation4 [shape = 'u8[8192]{0}', space=vmem, size = 0x2000, scoped, tag = 'input window, operand 1, single buffered']
    #allocation5 [shape = 's32[1]{0}', space=sflag, size = 0x4, scoped, tag = 'scoped memory for tpu_custom_call.1']
    #allocation6 [shape = 's32[1]{0}', space=sflag, size = 0x4, scoped, tag = 'scoped memory for tpu_custom_call.1']
    #allocation7 [shape = 'u8[2048]{0}', space=vmem, size = 0x800, scoped, tag = 'input window, operand 2, single buffered']
    #allocation8 [shape = 's32[1]{0}', space=sflag, size = 0x4, scoped, tag = 'scoped memory for tpu_custom_call.1']
    #allocation9 [shape = 'u8[2048]{0}', space=vmem, size = 0x800, scoped, tag = 'input window, operand 3, single buffered']
    #allocation10 [shape = 'u8[8192]{0}', space=vmem, size = 0x2000, scoped, tag = 'output window, operand 0, single buffered']
    %10 = vsyncpa [#allocation5], 0
    %11 = vsyncpa [#allocation8], 0
    %12 = vsyncpa [#allocation6], 0
    // Predicated region
    $region2: #{tpu_custom_call.1} parent=1 // pred_check
      _
    $region3: #{tpu_custom_call.1} parent=1 // pred_check_branch
      %14 = sbr.rel (0) target = $region5
    $region4: #{tpu_custom_call.1} parent=1 // pred_region
      %s16 = ssub.s32 256, 256
      %17 = vsyncadd [#allocation5], %s16
      %s18 = sshll.u32 [#allocation4], 4
      %s19 = int_to_ptr.vmem [resolvable:$true] %s18
      %24 = dma.hbm_to_vmem [thread:$0]  %s1, 256, %s19, [#allocation5], 128, 128, 8
    $region5: #{tpu_custom_call.1} parent=1 // pred_fallthru
      _
    // Predicated region
    $region6: #{tpu_custom_call.1} parent=1 // pred_check
      _
    $region7: #{tpu_custom_call.1} parent=1 // pred_check_branch
      %26 = sbr.rel (0) target = $region9
    $region8: #{tpu_custom_call.1} parent=1 // pred_region
      %s27 = sld [smem:[#allocation3]]
      %s29 = ssub.s32 64, 64
      %30 = vsyncadd [#allocation8], %s29
      %s31 = smul.addr %s27, 64
      %s32 = scalar_lea.hbm %s2, %s31
      %s34 = sshll.u32 [#allocation7], 4
      %s35 = int_to_ptr.vmem [resolvable:$true] %s34
      %37 = dma.hbm_to_vmem [thread:$0]  %s32, 64, %s35, [#allocation8]
    $region9: #{tpu_custom_call.1} parent=1 // pred_fallthru
      _
    // Predicated region
    $region10: #{tpu_custom_call.1} parent=1 // pred_check
      _
    $region11: #{tpu_custom_call.1} parent=1 // pred_check_branch
      %39 = sbr.rel (0) target = $region13
    $region12: #{tpu_custom_call.1} parent=1 // pred_region
      %s40 = sld [smem:[#allocation3]]
      %s42 = ssub.s32 64, 64
      %43 = vsyncadd [#allocation8], %s42
      %s44 = smul.addr %s40, 64
      %s45 = scalar_lea.hbm %s3, %s44
      %s47 = sshll.u32 [#allocation9], 4
      %s48 = int_to_ptr.vmem [resolvable:$true] %s47
      %50 = dma.hbm_to_vmem [thread:$0]  %s45, 64, %s48, [#allocation8]
    $region13: #{tpu_custom_call.1} parent=1 // pred_fallthru
      _
    // Predicated region
    $region14: #{tpu_custom_call.1} parent=1 // pred_check
      _
    $region15: #{tpu_custom_call.1} parent=1 // pred_check_branch
      %52 = sbr.rel (0) target = $region17
    $region16: #{tpu_custom_call.1} parent=1 // pred_region
      %53 = dma.done [#allocation5], 256
    $region17: #{tpu_custom_call.1} parent=1 // pred_fallthru
      _
    // Predicated region
    $region18: #{tpu_custom_call.1} parent=1 // pred_check
      _
    $region19: #{tpu_custom_call.1} parent=1 // pred_check_branch
      %55 = sbr.rel (0) target = $region21
    $region20: #{tpu_custom_call.1} parent=1 // pred_region
      %56 = dma.done [#allocation8], 64
    $region21: #{tpu_custom_call.1} parent=1 // pred_fallthru
      _
    // Predicated region
    $region22: #{tpu_custom_call.1} parent=1 // pred_check
      _
    $region23: #{tpu_custom_call.1} parent=1 // pred_check_branch
      %58 = sbr.rel (0) target = $region25
    $region24: #{tpu_custom_call.1} parent=1 // pred_region
      %59 = dma.done [#allocation8], 64
    $region25: #{tpu_custom_call.1} parent=1 // pred_fallthru
      _
    %s60 = sld [smem:[#allocation3]]
    %s61 = sld [smem:[#allocation3]]
    %v62 = vld [vmem:[#allocation4] sm:$0xff]
    %v63 = vld [vmem:[#allocation4 + $0x8] sm:$0xff]
    %v66 = vcombine.high %v62, %v62
    %v67 = vcombine.high %v63, %v63
    %vm70 = vcmask 1043456
    %v71 = vsel %vm70, %v62, 0.0
    %v72 = vsel %vm70, %v63, 0.0
    %v73 = vadd.f32 %v71, %v72
    %v74 = vsel %vm70, %v66, 0.0
    %v75 = vsel %vm70, %v67, 0.0
    %v76 = vadd.f32 %v74, %v75
    %v77 = vsel %vm70, %v73, 0.0
    %v78 = vsel %vm70, %v76, 0.0
    %v79 = vadd.f32 %v77, %v78
    %80 = vadd.xlane.f32.xlu0 %v79
    %v81 = vpop.xlane.xlu0 %80
    %v82 = vmul.f32 %v62, %v62
    %v83 = vmul.f32 %v63, %v63
    %v86 = vcombine.high %v82, %v82
    %v87 = vcombine.high %v83, %v83
    %v90 = vsel %vm70, %v82, 0.0
    %v91 = vsel %vm70, %v83, 0.0
    %v92 = vadd.f32 %v90, %v91
    %v93 = vsel %vm70, %v86, 0.0
    %v94 = vsel %vm70, %v87, 0.0
    %v95 = vadd.f32 %v93, %v94
    %v96 = vsel %vm70, %v92, 0.0
    %v97 = vsel %vm70, %v95, 0.0
    %v98 = vadd.f32 %v96, %v97
    %99 = vadd.xlane.f32.xlu0 %v98
    %v100 = vpop.xlane.xlu0 %99
    %v101 = vmul.f32 %v81, 0.001953125
    %v102 = vmul.f32 %v100, 0.001953125
    %v103 = vmul.f32 %v101, %v101
    %v104 = vsub.f32 %v102, %v103
    %v105 = vld [vmem:[#allocation7] sm:$0xf]
    %v106 = vadd.f32 %v104, 1e-05
    %v107 = vrsqrt.pop %v106
    %v108 = vmul.f32 %v105, %v107
    %v109 = vld [vmem:[#allocation9] sm:$0xf]
    %v110 = vmul.f32 %v101, %v108
    %v111 = vsub.f32 %v109, %v110
    %113 = vset.pattern.permute.xlu0 0
    %114 = vperm.xlu0 %113, %v108
    %v115 = vpop.permute.xlu0 %114
    %v117 = vunpack.c.l.s4 839922192
    %v118 = vunpack.c.0.s8 %v117
    %v119 = vlaneseq
    %v120 = vshrl.u32 %v119, 7
    %v121 = vsub.s32 %v118, %v120
    %v122 = vrot.slane %v115, %v121
    %v124 = vmul.f32 %v62, %v122
    %v125 = vmul.f32 %v63, %v122
    %127 = vset.pattern.permute.xlu0 0
    %128 = vperm.xlu0 %127, %v111
    %v129 = vpop.permute.xlu0 %128
    %v131 = vunpack.c.l.s4 839922192
    %v132 = vunpack.c.0.s8 %v131
    %v133 = vlaneseq
    %v134 = vshrl.u32 %v133, 7
    %v135 = vsub.s32 %v132, %v134
    %v136 = vrot.slane %v129, %v135
    %v138 = vadd.f32 %v124, %v136
    %v139 = vadd.f32 %v125, %v136
    %140 = vst [vmem:[#allocation10] sm:$0xff] %v138
    %141 = vst [vmem:[#allocation10 + $0x8] sm:$0xff] %v139
    // Predicated region
    $region26: #{tpu_custom_call.1} parent=1 // pred_check
      _
    $region27: #{tpu_custom_call.1} parent=1 // pred_check_branch
      %143 = sbr.rel (0) target = $region29
    $region28: #{tpu_custom_call.1} parent=1 // pred_region
      %s145 = ssub.s32 256, 256
      %146 = vsyncadd [#allocation6], %s145
      %s147 = sshll.u32 [#allocation10], 4
      %s148 = int_to_ptr.vmem [resolvable:$true] %s147
      %153 = dma.vmem_to_hbm [thread:$0]  %s148, 256, %s4, [#allocation6], 128, 128, 8
    $region29: #{tpu_custom_call.1} parent=1 // pred_fallthru
      _
    // Predicated region
    $region30: #{tpu_custom_call.1} parent=1 // pred_check
      _
    $region31: #{tpu_custom_call.1} parent=1 // pred_check_branch
      %155 = sbr.rel (0) target = $region33
    $region32: #{tpu_custom_call.1} parent=1 // pred_region
      %156 = dma.done [#allocation6], 256
    $region33: #{tpu_custom_call.1} parent=1 // pred_fallthru
      _
    %157 = vsyncpa [#allocation5], 1
    %158 = vsyncpa [#allocation8], 1
    %159 = vsyncpa [#allocation6], 1

</llo_original>
